<compile_context>
chip_gen: v7x
topology: tpu7x:2x2x1
jax: 0.10.0
libtpu: 0.0.40
codegen_flags: <defaults>
</compile_context>

<pallas_src>
import jax
import jax.numpy as jnp
from jax.experimental import pallas as pl
from jax.experimental.pallas import tpu as pltpu

_LANES = 128
_ROW_ALIGN = 16                       # sublane alignment safe for both f32 and bf16 tiles
_OUT_SUBLANES = 8
_TARGET_STEP_BYTES = 4 * 1024 * 1024  # streamed bytes per grid step (amortizes ~0.35us/step)
_MAX_BUF_BYTES = 6 * 1024 * 1024      # per-buffer cap -> <=12 MiB double-buffered streamed VMEM
_VMEM_LIMIT = 32 * 1024 * 1024        # safe on v5e/v6e/v7x (v7x scoped default, v7x phys 64 MiB)


def _round_up(x, m):
    return ((x + m - 1) // m) * m


def _pad128(x):
    return _round_up(max(int(x), 1), _LANES)


def _num_parallel_cores():
    # v7x has two TensorCores per chip that can stream independent halves of the batch;
    # v5e/v6e have one, where a size-2 "parallel" axis would only cost padding + epilogue.
    try:
        kind = jax.devices()[0].device_kind.lower()
    except Exception:
        return 1
    return 2 if "v7" in kind else 1


def _pinn_loss_kernel(pred_ref, x_ref, tgt_ref, wb_ref, wa_ref, brep_ref,
                      mse_ref, pinn_ref,
                      mse_acc, pinn_acc):
    i = pl.program_id(1)

    @pl.when(i == 0)
    def _init():
        mse_acc[...] = jnp.zeros_like(mse_acc)
        pinn_acc[...] = jnp.zeros_like(pinn_acc)

    p = pred_ref[...].astype(jnp.float32)      # (R, r*dp): r samples packed per row
    t = tgt_ref[...].astype(jnp.float32)       # (R, r*dp)
    x = x_ref[...].astype(jnp.float32)         # (R, r*dx)

    # ---- MSE: per-lane partial sums; the cross-lane reduce only happens at finalize.
    diff = p - t
    mse_acc[...] += jnp.sum(diff * diff, axis=0, keepdims=True)

    # ---- Constraint residual.  Wb / Wa are r-fold block-diagonal copies of B^T / A^T, so
    # u[g, a*m + i] = (B @ pred_s + A @ x_s)_i for sample s = g*r + a: two small lane-dense
    # MXU matmuls per tile (default precision, f32 accumulation).
    u = (jnp.dot(p, wb_ref[...], preferred_element_type=jnp.float32)
         + jnp.dot(x, wa_ref[...], preferred_element_type=jnp.float32))   # (R, r*m)
    resid = u - brep_ref[...]                  # subtract b per tile (no (u-b)^2 expansion)
    pinn_acc[...] += jnp.sum(resid * resid, axis=0, keepdims=True)

    @pl.when(i == pl.num_programs(1) - 1)
    def _finalize():
        mse_ref[...] = jnp.broadcast_to(
            jnp.sum(mse_acc[...], keepdims=True), mse_ref.shape)
        pinn_ref[...] = jnp.broadcast_to(
            jnp.sum(pinn_acc[...], keepdims=True), pinn_ref.shape)


def pinn_loss(X, pred, target, A, B, b, mu, *, tile_rows=None, core_split=None):
    """Returns (mse_loss, pinn_loss) scalars, matching PINNLoss.forward (reduction='mean')."""
    n, dx = X.shape
    n2, dp = pred.shape
    assert n2 == n and target.shape == pred.shape
    m, dx2 = A.shape
    assert dx2 == dx and B.shape == (m, dp) and b.shape == (m,)

    def _prep(a):
        # Stream f32 / bf16 natively (upcast happens inside the kernel); cast anything else.
        return a if a.dtype in (jnp.float32, jnp.bfloat16) else a.astype(jnp.float32)

    x_, p_, t_ = _prep(X), _prep(pred), _prep(target)
    itemsize = max(x_.dtype.itemsize, p_.dtype.itemsize)

    # Pack r samples per streamed row -> lane-dense tiles with no transpose/concat HBM pass.
    # The reshapes below are bitcasts of contiguous row-major arrays (no data movement).
    r = max(1, _LANES // max(dp, dx))

    n_r = _round_up(n, r)
    if n_r != n:                              # tiny sample padding only when N % r != 0
        pad = ((0, n_r - n), (0, 0))
        p_, x_, t_ = jnp.pad(p_, pad), jnp.pad(x_, pad), jnp.pad(t_, pad)
    rows = n_r // r
    p_r = p_.reshape(rows, r * dp)
    x_r = x_.reshape(rows, r * dx)
    t_r = t_.reshape(rows, r * dp)

    # Tiny constant operands, resident in VMEM for the whole grid.
    eye_r = jnp.eye(r, dtype=jnp.float32)
    wb = jnp.kron(eye_r, B.astype(jnp.float32).T)                 # (r*dp, r*m)
    wa = jnp.kron(eye_r, A.astype(jnp.float32).T)                 # (r*dx, r*m)
    b32 = b.astype(jnp.float32)
    b_rep = jnp.tile(b32, r).reshape(1, r * m)                    # (1, r*m)

    split = _num_parallel_cores() if core_split is None else int(core_split)
    split = max(1, min(split, 2))

    # Tile rows: >= ~4 MiB streamed per grid step, <= ~6 MiB per streamed buffer so the
    # double-buffered working set stays well inside the 32 MiB scoped VMEM limit.
    row_stream_bytes = (2 * dp + dx) * r * itemsize
    row_vmem_bytes = (2 * _pad128(r * dp) + _pad128(r * dx)) * itemsize
    if tile_rows is None:
        by_stream = _TARGET_STEP_BYTES // row_stream_bytes
        by_vmem = _MAX_BUF_BYTES // row_vmem_bytes
        tile_rows = max(_ROW_ALIGN, min(by_stream, by_vmem))
    tile_rows = min(int(tile_rows), _round_up(pl.cdiv(rows, split), _ROW_ALIGN))
    tile_rows = _round_up(max(tile_rows, _ROW_ALIGN), _ROW_ALIGN)

    nb = pl.cdiv(rows, split * tile_rows)
    rows_pad = split * nb * tile_rows
    if rows_pad != rows:
        pad = ((0, rows_pad - rows), (0, 0))
        p_r, x_r, t_r = jnp.pad(p_r, pad), jnp.pad(x_r, pad), jnp.pad(t_r, pad)

    out_rows = split * _OUT_SUBLANES
    # NOTE: pred/X/target stay as three streamed operands on purpose — merging them would
    # require a wrapper concat (an extra HBM pass) that costs more than the saved DMA setup.
    mse_parts, pinn_parts = pl.pallas_call(
        _pinn_loss_kernel,
        out_shape=(jax.ShapeDtypeStruct((out_rows, _LANES), jnp.float32),
                   jax.ShapeDtypeStruct((out_rows, _LANES), jnp.float32)),
        grid_spec=pltpu.PrefetchScalarGridSpec(
            num_scalar_prefetch=0,
            grid=(split, nb),
            in_specs=[
                pl.BlockSpec((tile_rows, r * dp), lambda c, i, nb=nb: (c * nb + i, 0)),
                pl.BlockSpec((tile_rows, r * dx), lambda c, i, nb=nb: (c * nb + i, 0)),
                pl.BlockSpec((tile_rows, r * dp), lambda c, i, nb=nb: (c * nb + i, 0)),
                pl.BlockSpec((r * dp, r * m), lambda c, i: (0, 0)),   # blockdiag(B^T), resident
                pl.BlockSpec((r * dx, r * m), lambda c, i: (0, 0)),   # blockdiag(A^T), resident
                pl.BlockSpec((1, r * m), lambda c, i: (0, 0)),        # b repeated r times
            ],
            out_specs=[
                pl.BlockSpec((_OUT_SUBLANES, _LANES), lambda c, i: (c, 0)),
                pl.BlockSpec((_OUT_SUBLANES, _LANES), lambda c, i: (c, 0)),
            ],
            scratch_shapes=[
                pltpu.VMEM((1, r * dp), jnp.float32),   # per-lane MSE partial sums
                pltpu.VMEM((1, r * m), jnp.float32),    # per-lane residual^2 partial sums
            ],
        ),
        compiler_params=pltpu.CompilerParams(
            dimension_semantics=("parallel", "arbitrary"),
            vmem_limit_bytes=_VMEM_LIMIT,
        ),
    )(p_r, x_r, t_r, wb, wa, b_rep)

    mse_sum = jnp.sum(mse_parts[::_OUT_SUBLANES, 0])
    pinn_sum = jnp.sum(pinn_parts[::_OUT_SUBLANES, 0])

    # Each zero-padded sample contributes exactly ||b||^2 to pinn_sum; correct once here.
    n_extra = rows_pad * r - n
    mse = mse_sum / jnp.float32(n * dp)
    pinn = (jnp.asarray(mu, jnp.float32)
            * (pinn_sum - jnp.float32(n_extra) * jnp.sum(b32 * b32))
            / jnp.float32(m * n))
    return mse, pinn


def pinn_loss_ref(X, pred, target, A, B, b, mu):
    X = X.astype(jnp.float32)
    pred = pred.astype(jnp.float32)
    target = target.astype(jnp.float32)
    A = A.astype(jnp.float32)
    B = B.astype(jnp.float32)
    b = b.astype(jnp.float32)
    mse = jnp.mean((pred - target) ** 2)
    resid = (jnp.dot(B, pred.T, precision=jax.lax.Precision.HIGHEST)
             + jnp.dot(A, X.T, precision=jax.lax.Precision.HIGHEST)
             - b[:, None])
    pinn = jnp.mean(mu * resid ** 2)
    return mse, pinn


if __name__ == "__main__":
    key = jax.random.PRNGKey(0)
    k1, k2, k3, k4, k5, k6 = jax.random.split(key, 6)

    # Small shapes consistent with the module's forward.
    N, dx, dp, m = 2048, 16, 8, 8
    mu = 0.5

    X = jax.random.normal(k1, (N, dx), dtype=jnp.float32)
    pred = jax.random.normal(k2, (N, dp), dtype=jnp.float32)
    target = jax.random.normal(k3, (N, dp), dtype=jnp.float32)
    A = jax.random.normal(k4, (m, dx), dtype=jnp.float32)
    B = jax.random.normal(k5, (m, dp), dtype=jnp.float32)
    b = jax.random.normal(k6, (m,), dtype=jnp.float32)

    mse_r, pinn_r = pinn_loss_ref(X, pred, target, A, B, b, mu)

    # 1) Default auto-tiling (single big tile for this small batch).
    mse, pinn = pinn_loss(X, pred, target, A, B, b, mu)
    jax.block_until_ready((mse, pinn))
    assert jnp.allclose(mse, mse_r, rtol=1e-3, atol=1e-3), (mse, mse_r)
    assert jnp.allclose(pinn, pinn_r, rtol=1e-3, atol=1e-3), (pinn, pinn_r)

    # 2) Forced multi-tile + 2-way core-split path (grid = (2, 4)).
    mse2, pinn2 = pinn_loss(X, pred, target, A, B, b, mu, tile_rows=32, core_split=2)
    jax.block_until_ready((mse2, pinn2))
    assert jnp.allclose(mse2, mse_r, rtol=1e-3, atol=1e-3), (mse2, mse_r)
    assert jnp.allclose(pinn2, pinn_r, rtol=1e-3, atol=1e-3), (pinn2, pinn_r)

    # 3) Ragged batch (exercises both the sample padding and the row padding paths).
    Nr = 1001
    mse3, pinn3 = pinn_loss(X[:Nr], pred[:Nr], target[:Nr], A, B, b, mu, tile_rows=32)
    jax.block_until_ready((mse3, pinn3))
    mse3_r, pinn3_r = pinn_loss_ref(X[:Nr], pred[:Nr], target[:Nr], A, B, b, mu)
    assert jnp.allclose(mse3, mse3_r, rtol=1e-3, atol=1e-3), (mse3, mse3_r)
    assert jnp.allclose(pinn3, pinn3_r, rtol=1e-3, atol=1e-3), (pinn3, pinn3_r)

    print("KERNEL_OK")
</pallas_src>

<mosaic_0001>
module attributes {stable_mosaic.version = 11 : i64} {
  func.func @_pinn_loss_kernel(%arg0: i32, %arg1: i32, %arg2: memref<256x64xf32, #tpu.memory_space<vmem>>, %arg3: memref<256x128xf32, #tpu.memory_space<vmem>>, %arg4: memref<256x64xf32, #tpu.memory_space<vmem>>, %arg5: memref<64x64xf32, #tpu.memory_space<vmem>>, %arg6: memref<128x64xf32, #tpu.memory_space<vmem>>, %arg7: memref<1x64xf32, #tpu.memory_space<vmem>>, %arg8: memref<8x128xf32, #tpu.memory_space<vmem>>, %arg9: memref<8x128xf32, #tpu.memory_space<vmem>>, %arg10: memref<1x64xf32, #tpu.memory_space<vmem>>, %arg11: memref<1x64xf32, #tpu.memory_space<vmem>>) attributes {dimension_semantics = [#tpu.dimension_semantics<parallel>, #tpu.dimension_semantics<arbitrary>], iteration_bounds = array<i64: 1, 1>, scalar_prefetch = 0 : i64, scratch_operands = 2 : i64, tpu.core_type = #tpu.core_type<tc>, window_params = [{transform_indices = @transform_0, window_bounds = array<i64: 256, 64>}, {transform_indices = @transform_1, window_bounds = array<i64: 256, 128>}, {transform_indices = @transform_2, window_bounds = array<i64: 256, 64>}, {pipeline_mode = #tpu.pipeline_mode<synchronous>, transform_indices = @transform_3, window_bounds = array<i64: 64, 64>}, {pipeline_mode = #tpu.pipeline_mode<synchronous>, transform_indices = @transform_4, window_bounds = array<i64: 128, 64>}, {pipeline_mode = #tpu.pipeline_mode<synchronous>, transform_indices = @transform_5, window_bounds = array<i64: 1, 64>}, {transform_indices = @transform_6, window_bounds = array<i64: 8, 128>}, {transform_indices = @transform_7, window_bounds = array<i64: 8, 128>}]} {
    %c0_i32 = arith.constant 0 : i32
    %0 = arith.cmpi eq, %arg1, %c0_i32 : i32
    %1 = arith.extui %0 : i1 to i32
    %c0_i32_0 = arith.constant 0 : i32
    %2 = arith.cmpi ne, %1, %c0_i32_0 : i32
    scf.if %2 {
      %cst_25 = arith.constant 0.000000e+00 : f32
      %30 = vector.broadcast %cst_25 : f32 to vector<1x64xf32>
      %c0_26 = arith.constant 0 : index
      %c0_27 = arith.constant 0 : index
      %31 = vector.load %arg10[%c0_26, %c0_27] : memref<1x64xf32, #tpu.memory_space<vmem>>, vector<1x64xf32>
      tpu.vector_store %arg10[%c0_26, %c0_27], %30 {strides = array<i32>} : memref<1x64xf32, #tpu.memory_space<vmem>>, vector<1x64xf32>,
      %cst_28 = arith.constant 0.000000e+00 : f32
      %32 = vector.broadcast %cst_28 : f32 to vector<1x64xf32>
      %c0_29 = arith.constant 0 : index
      %c0_30 = arith.constant 0 : index
      %33 = vector.load %arg11[%c0_29, %c0_30] : memref<1x64xf32, #tpu.memory_space<vmem>>, vector<1x64xf32>
      tpu.vector_store %arg11[%c0_29, %c0_30], %32 {strides = array<i32>} : memref<1x64xf32, #tpu.memory_space<vmem>>, vector<1x64xf32>,
    } else {
    }
    %c0 = arith.constant 0 : index
    %c0_1 = arith.constant 0 : index
    %3 = vector.load %arg2[%c0, %c0_1] : memref<256x64xf32, #tpu.memory_space<vmem>>, vector<256x64xf32>
    %c0_2 = arith.constant 0 : index
    %c0_3 = arith.constant 0 : index
    %4 = vector.load %arg4[%c0_2, %c0_3] : memref<256x64xf32, #tpu.memory_space<vmem>>, vector<256x64xf32>
    %c0_4 = arith.constant 0 : index
    %c0_5 = arith.constant 0 : index
    %5 = vector.load %arg3[%c0_4, %c0_5] : memref<256x128xf32, #tpu.memory_space<vmem>>, vector<256x128xf32>
    %6 = arith.subf %3, %4 : vector<256x64xf32>
    %c0_6 = arith.constant 0 : index
    %c0_7 = arith.constant 0 : index
    %7 = vector.load %arg10[%c0_6, %c0_7] : memref<1x64xf32, #tpu.memory_space<vmem>>, vector<1x64xf32>
    %8 = arith.mulf %6, %6 : vector<256x64xf32>
    %cst = arith.constant dense<0.000000e+00> : vector<64xf32>
    %9 = vector.multi_reduction <add>, %8, %cst [0] : vector<256x64xf32> to vector<64xf32>
    %10 = vector.shape_cast %9 : vector<64xf32> to vector<1x64xf32>
    %11 = arith.addf %7, %10 : vector<1x64xf32>
    %c0_8 = arith.constant 0 : index
    %c0_9 = arith.constant 0 : index
    %12 = vector.load %arg10[%c0_8, %c0_9] : memref<1x64xf32, #tpu.memory_space<vmem>>, vector<1x64xf32>
    tpu.vector_store %arg10[%c0_8, %c0_9], %11 {strides = array<i32>} : memref<1x64xf32, #tpu.memory_space<vmem>>, vector<1x64xf32>,
    %c0_10 = arith.constant 0 : index
    %c0_11 = arith.constant 0 : index
    %13 = vector.load %arg5[%c0_10, %c0_11] : memref<64x64xf32, #tpu.memory_space<vmem>>, vector<64x64xf32>
    %cst_12 = arith.constant dense<0.000000e+00> : vector<256x64xf32>
    %14 = tpu.matmul %3, %13, %cst_12 {dimension_numbers = #tpu.dot_dimension_numbers<[1], [0], [0], [1], [0, 0, 1, 1], [], []>} : vector<256x64xf32>, vector<64x64xf32>, vector<256x64xf32> -> vector<256x64xf32>
    %c0_13 = arith.constant 0 : index
    %c0_14 = arith.constant 0 : index
    %15 = vector.load %arg6[%c0_13, %c0_14] : memref<128x64xf32, #tpu.memory_space<vmem>>, vector<128x64xf32>
    %cst_15 = arith.constant dense<0.000000e+00> : vector<256x64xf32>
    %16 = tpu.matmul %5, %15, %cst_15 {dimension_numbers = #tpu.dot_dimension_numbers<[1], [0], [0], [1], [0, 0, 1, 1], [], []>} : vector<256x128xf32>, vector<128x64xf32>, vector<256x64xf32> -> vector<256x64xf32>
    %17 = arith.addf %14, %16 : vector<256x64xf32>
    %c0_16 = arith.constant 0 : index
    %c0_17 = arith.constant 0 : index
    %18 = vector.load %arg7[%c0_16, %c0_17] : memref<1x64xf32, #tpu.memory_space<vmem>>, vector<1x64xf32>
    %19 = vector.broadcast %18 : vector<1x64xf32> to vector<256x64xf32>
    %20 = arith.subf %17, %19 : vector<256x64xf32>
    %c0_18 = arith.constant 0 : index
    %c0_19 = arith.constant 0 : index
    %21 = vector.load %arg11[%c0_18, %c0_19] : memref<1x64xf32, #tpu.memory_space<vmem>>, vector<1x64xf32>
    %22 = arith.mulf %20, %20 : vector<256x64xf32>
    %cst_20 = arith.constant dense<0.000000e+00> : vector<64xf32>
    %23 = vector.multi_reduction <add>, %22, %cst_20 [0] : vector<256x64xf32> to vector<64xf32>
    %24 = vector.shape_cast %23 : vector<64xf32> to vector<1x64xf32>
    %25 = arith.addf %21, %24 : vector<1x64xf32>
    %c0_21 = arith.constant 0 : index
    %c0_22 = arith.constant 0 : index
    %26 = vector.load %arg11[%c0_21, %c0_22] : memref<1x64xf32, #tpu.memory_space<vmem>>, vector<1x64xf32>
    tpu.vector_store %arg11[%c0_21, %c0_22], %25 {strides = array<i32>} : memref<1x64xf32, #tpu.memory_space<vmem>>, vector<1x64xf32>,
    %c0_i32_23 = arith.constant 0 : i32
    %27 = arith.cmpi eq, %arg1, %c0_i32_23 : i32
    %28 = arith.extui %27 : i1 to i32
    %c0_i32_24 = arith.constant 0 : i32
    %29 = arith.cmpi ne, %28, %c0_i32_24 : i32
    scf.if %29 {
      %c0_25 = arith.constant 0 : index
      %c0_26 = arith.constant 0 : index
      %30 = vector.load %arg10[%c0_25, %c0_26] : memref<1x64xf32, #tpu.memory_space<vmem>>, vector<1x64xf32>
      %31 = vector.shape_cast %30 : vector<1x64xf32> to vector<1x1x64xf32>
      %cst_27 = arith.constant dense<0.000000e+00> : vector<1xf32>
      %32 = vector.multi_reduction <add>, %31, %cst_27 [1, 2] : vector<1x1x64xf32> to vector<1xf32>
      %33 = vector.shape_cast %32 : vector<1xf32> to vector<1x1x1xf32>
      %34 = vector.extract %33[0, 0, 0] : f32 from vector<1x1x1xf32>
      %35 = vector.broadcast %34 : f32 to vector<1x1xf32>
      %36 = vector.shape_cast %35 : vector<1x1xf32> to vector<1x1xf32>
      %37 = vector.broadcast %36 : vector<1x1xf32> to vector<8x128xf32>
      %c0_28 = arith.constant 0 : index
      %c0_29 = arith.constant 0 : index
      %38 = vector.load %arg8[%c0_28, %c0_29] : memref<8x128xf32, #tpu.memory_space<vmem>>, vector<8x128xf32>
      tpu.vector_store %arg8[%c0_28, %c0_29], %37 {strides = array<i32>} : memref<8x128xf32, #tpu.memory_space<vmem>>, vector<8x128xf32>,
      %c0_30 = arith.constant 0 : index
      %c0_31 = arith.constant 0 : index
      %39 = vector.load %arg11[%c0_30, %c0_31] : memref<1x64xf32, #tpu.memory_space<vmem>>, vector<1x64xf32>
      %40 = vector.shape_cast %39 : vector<1x64xf32> to vector<1x1x64xf32>
      %cst_32 = arith.constant dense<0.000000e+00> : vector<1xf32>
      %41 = vector.multi_reduction <add>, %40, %cst_32 [1, 2] : vector<1x1x64xf32> to vector<1xf32>
      %42 = vector.shape_cast %41 : vector<1xf32> to vector<1x1x1xf32>
      %43 = vector.extract %42[0, 0, 0] : f32 from vector<1x1x1xf32>
      %44 = vector.broadcast %43 : f32 to vector<1x1xf32>
      %45 = vector.shape_cast %44 : vector<1x1xf32> to vector<1x1xf32>
      %46 = vector.broadcast %45 : vector<1x1xf32> to vector<8x128xf32>
      %c0_33 = arith.constant 0 : index
      %c0_34 = arith.constant 0 : index
      %47 = vector.load %arg9[%c0_33, %c0_34] : memref<8x128xf32, #tpu.memory_space<vmem>>, vector<8x128xf32>
      tpu.vector_store %arg9[%c0_33, %c0_34], %46 {strides = array<i32>} : memref<8x128xf32, #tpu.memory_space<vmem>>, vector<8x128xf32>,
    } else {
    }
    return
  }
  func.func @transform_0(%arg0: i32, %arg1: i32) -> (i32, i32) {
    %c1_i32 = arith.constant 1 : i32
    %0 = arith.muli %arg0, %c1_i32 : i32
    %1 = arith.addi %0, %arg1 : i32
    %c0_i32 = arith.constant 0 : i32
    %c0_i32_0 = arith.constant 0 : i32
    return %1, %c0_i32 : i32, i32
  }
  func.func @transform_1(%arg0: i32, %arg1: i32) -> (i32, i32) {
    %c1_i32 = arith.constant 1 : i32
    %0 = arith.muli %arg0, %c1_i32 : i32
    %1 = arith.addi %0, %arg1 : i32
    %c0_i32 = arith.constant 0 : i32
    %c0_i32_0 = arith.constant 0 : i32
    return %1, %c0_i32 : i32, i32
  }
  func.func @transform_2(%arg0: i32, %arg1: i32) -> (i32, i32) {
    %c1_i32 = arith.constant 1 : i32
    %0 = arith.muli %arg0, %c1_i32 : i32
    %1 = arith.addi %0, %arg1 : i32
    %c0_i32 = arith.constant 0 : i32
    %c0_i32_0 = arith.constant 0 : i32
    return %1, %c0_i32 : i32, i32
  }
  func.func @transform_3(%arg0: i32, %arg1: i32) -> (i32, i32) {
    %c0_i32 = arith.constant 0 : i32
    %c0_i32_0 = arith.constant 0 : i32
    %c0_i32_1 = arith.constant 0 : i32
    return %c0_i32, %c0_i32_0 : i32, i32
  }
  func.func @transform_4(%arg0: i32, %arg1: i32) -> (i32, i32) {
    %c0_i32 = arith.constant 0 : i32
    %c0_i32_0 = arith.constant 0 : i32
    %c0_i32_1 = arith.constant 0 : i32
    return %c0_i32, %c0_i32_0 : i32, i32
  }
  func.func @transform_5(%arg0: i32, %arg1: i32) -> (i32, i32) {
    %c0_i32 = arith.constant 0 : i32
    %c0_i32_0 = arith.constant 0 : i32
    %c0_i32_1 = arith.constant 0 : i32
    return %c0_i32, %c0_i32_0 : i32, i32
  }
  func.func @transform_6(%arg0: i32, %arg1: i32) -> (i32, i32) {
    %c0_i32 = arith.constant 0 : i32
    %c0_i32_0 = arith.constant 0 : i32
    return %arg0, %c0_i32 : i32, i32
  }
  func.func @transform_7(%arg0: i32, %arg1: i32) -> (i32, i32) {
    %c0_i32 = arith.constant 0 : i32
    %c0_i32_0 = arith.constant 0 : i32
    return %arg0, %c0_i32 : i32, i32
  }
}

</mosaic_0001>

<llo_original>
// kernel: tpu_custom_call.1
$region0: #{tpu_custom_call.1}
  #allocation0 [shape = 'u32[]', space=smem, size = 0x4, offset = 0x4, fixed_abs, tag = 'smem constant byte address 0x4 - core index']
  #allocation1 [shape = 'u32[144,128]{1,0:T(1,128)}', space=vmem, size = 0x12000, scoped, tag = 'internal scratch']
  #allocation2 [shape = 'f32[1,64]{1,0:T(1,128)}', space=vmem, size = 0x200, scoped, tag = 'scratch operand']
  #allocation3 [shape = 'f32[1,64]{1,0:T(1,128)}', space=vmem, size = 0x200, scoped, tag = 'scratch operand']
  %s0 = inlined_call_operand.vmem [shape: f32[256,64], index: 0, kind: input, shape index: {}]
  %s1 = inlined_call_operand.vmem [shape: f32[256,128], index: 1, kind: input, shape index: {}]
  %s2 = inlined_call_operand.vmem [shape: f32[256,64], index: 2, kind: input, shape index: {}]
  %s3 = inlined_call_operand.vmem [shape: f32[64,64], index: 3, kind: input, shape index: {}]
  %s4 = inlined_call_operand.vmem [shape: f32[128,64], index: 4, kind: input, shape index: {}]
  %s5 = inlined_call_operand.vmem [shape: f32[1,64], index: 5, kind: input, shape index: {}]
  %s6 = inlined_call_operand.hbm [shape: f32[8,128], index: 6, kind: output, shape index: {0}]
  %s7 = inlined_call_operand.hbm [shape: f32[8,128], index: 7, kind: output, shape index: {1}]
  %8 = xla_tuple %s6, %s7
  %s9 = sld [smem:[#allocation0]]
  $region50: #{tpu_custom_call.1} parent=0
    _
  %s11 = ssub.s32 1, %s9
  %s12 = scalar_select 0, %s11, %s9
  $region1: #{tpu_custom_call.1} parent=0
    #allocation4 [shape = 'u8[4096]{0}', space=vmem, size = 0x1000, scoped, tag = 'output window, operand 0, single buffered']
    #allocation5 [shape = 's32[1]{0}', space=sflag, size = 0x4, scoped, tag = 'scoped memory for tpu_custom_call.1']
    #allocation6 [shape = 'u8[4096]{0}', space=vmem, size = 0x1000, scoped, tag = 'output window, operand 1, single buffered']
    #allocation7 [shape = 's32[1]{0}', space=sflag, size = 0x4, scoped, tag = 'scoped memory for tpu_custom_call.1']
    %13 = vsyncpa [#allocation5], 0
    %14 = vsyncpa [#allocation7], 0
    // Predicated region
    $region2: #{tpu_custom_call.1} parent=1 // pred_check
      _
    $region3: #{tpu_custom_call.1} parent=1 // pred_check_branch
      %16 = sbr.rel (0) target = $region5
    $region4: #{tpu_custom_call.1} parent=1 // pred_region
      %s17 = sadd.s32 0, 0
      %s18 = smul.u32 32, %s17
      %p19 = scmp.lt.s32.totalorder %s18, 31
      %s20 = scalar_select %p19, %s18, 31
      %s21 = smul.addr %s20, 8
      %s22 = scalar_lea.vmem %s0, %s21
      %s23 = sadd.s32 0, 0
      %s24 = smul.u32 32, %s23
    $region5: #{tpu_custom_call.1} parent=1 // pred_fallthru
      _
    // Predicated region
    $region6: #{tpu_custom_call.1} parent=1 // pred_check
      _
    $region7: #{tpu_custom_call.1} parent=1 // pred_check_branch
      %26 = sbr.rel (0) target = $region9
    $region8: #{tpu_custom_call.1} parent=1 // pred_region
      %s27 = sadd.s32 0, 0
      %s28 = smul.u32 32, %s27
      %p29 = scmp.lt.s32.totalorder %s28, 31
      %s30 = scalar_select %p29, %s28, 31
      %s31 = smul.addr %s30, 8
      %s32 = scalar_lea.vmem %s1, %s31
      %s33 = sadd.s32 0, 0
      %s34 = smul.u32 32, %s33
    $region9: #{tpu_custom_call.1} parent=1 // pred_fallthru
      _
    // Predicated region
    $region10: #{tpu_custom_call.1} parent=1 // pred_check
      _
    $region11: #{tpu_custom_call.1} parent=1 // pred_check_branch
      %36 = sbr.rel (0) target = $region13
    $region12: #{tpu_custom_call.1} parent=1 // pred_region
      %s37 = sadd.s32 0, 0
      %s38 = smul.u32 32, %s37
      %p39 = scmp.lt.s32.totalorder %s38, 31
      %s40 = scalar_select %p39, %s38, 31
      %s41 = smul.addr %s40, 8
      %s42 = scalar_lea.vmem %s2, %s41
      %s43 = sadd.s32 0, 0
      %s44 = smul.u32 32, %s43
    $region13: #{tpu_custom_call.1} parent=1 // pred_fallthru
      _
    // Predicated region
    $region14: #{tpu_custom_call.1} parent=1 // pred_check
      _
    $region15: #{tpu_custom_call.1} parent=1 // pred_check_branch
      %46 = sbr.rel (0) target = $region17
    $region16: #{tpu_custom_call.1} parent=1 // pred_region
      _
    $region17: #{tpu_custom_call.1} parent=1 // pred_fallthru
      _
    // Predicated region
    $region18: #{tpu_custom_call.1} parent=1 // pred_check
      _
    $region19: #{tpu_custom_call.1} parent=1 // pred_check_branch
      %48 = sbr.rel (0) target = $region21
    $region20: #{tpu_custom_call.1} parent=1 // pred_region
      _
    $region21: #{tpu_custom_call.1} parent=1 // pred_fallthru
      _
    // Predicated region
    $region22: #{tpu_custom_call.1} parent=1 // pred_check
      _
    $region23: #{tpu_custom_call.1} parent=1 // pred_check_branch
      %50 = sbr.rel (0) target = $region25
    $region24: #{tpu_custom_call.1} parent=1 // pred_region
      _
    $region25: #{tpu_custom_call.1} parent=1 // pred_fallthru
      _
    %s51 = sadd.s32 0, 0
    %s52 = smul.u32 32, %s51
    %p53 = scmp.lt.s32.totalorder %s52, 31
    %s54 = scalar_select %p53, %s52, 31
    %s55 = smul.addr %s54, 8
    %s56 = scalar_lea.vmem %s0, %s55
    %s57 = sadd.s32 0, 0
    %s58 = smul.u32 32, %s57
    %p59 = scmp.lt.s32.totalorder %s58, 31
    %s60 = scalar_select %p59, %s58, 31
    %s61 = smul.addr %s60, 8
    %s62 = scalar_lea.vmem %s1, %s61
    %s63 = sadd.s32 0, 0
    %s64 = smul.u32 32, %s63
    %p65 = scmp.lt.s32.totalorder %s64, 31
    %s66 = scalar_select %p65, %s64, 31
    %s67 = smul.addr %s66, 8
    %s68 = scalar_lea.vmem %s2, %s67
    %s69 = sadd.s32 0, 0
    %s70 = smul.u32 32, %s69
    %p71 = scmp.lt.s32.totalorder %s70, 31
    %s72 = scalar_select %p71, %s70, 31
    %s73 = smul.addr %s72, 8
    %s74 = scalar_lea.vmem %s0, %s73
    %s75 = sadd.s32 0, 0
    %s76 = smul.u32 32, %s75
    %s77 = sadd.s32 0, 0
    %s78 = smul.u32 32, %s77
    %p79 = scmp.lt.s32.totalorder %s78, 31
    %s80 = scalar_select %p79, %s78, 31
    %s81 = smul.addr %s80, 8
    %s82 = scalar_lea.vmem %s1, %s81
    %s83 = sadd.s32 0, 0
    %s84 = smul.u32 32, %s83
    %s85 = sadd.s32 0, 0
    %s86 = smul.u32 32, %s85
    %p87 = scmp.lt.s32.totalorder %s86, 31
    %s88 = scalar_select %p87, %s86, 31
    %s89 = smul.addr %s88, 8
    %s90 = scalar_lea.vmem %s2, %s89
    %s91 = sadd.s32 0, 0
    %s92 = smul.u32 32, %s91
    %p93 = scmp.eq.s32.totalorder 0, 0
    // Predicated region
    $region26: #{tpu_custom_call.1} parent=1 // pred_check
      %p94 = pneg %p93
    $region27: #{tpu_custom_call.1} parent=1 // pred_check_branch
      %96 = sbr.rel (%p94) target = $region29
    $region28: #{tpu_custom_call.1} parent=1 // pred_region
      %vm97 = vcmask 516096
      %98 = vst.msk [vmem:[#allocation2] sm:$0x1] %vm97, 0.0
      %99 = vst.msk [vmem:[#allocation3] sm:$0x1] %vm97, 0.0
    $region29: #{tpu_custom_call.1} parent=1 // pred_fallthru
      _
    %v100 = vld [vmem:[%s74] sm:$0xff]
    %v101 = vld [vmem:[%s74 + $0x8] sm:$0xff]
    %v102 = vld [vmem:[%s74 + $0x10] sm:$0xff]
    %v103 = vld [vmem:[%s74 + $0x18] sm:$0xff]
    %v104 = vld [vmem:[%s74 + $0x20] sm:$0xff]
    %v105 = vld [vmem:[%s74 + $0x28] sm:$0xff]
    %v106 = vld [vmem:[%s74 + $0x30] sm:$0xff]
    %v107 = vld [vmem:[%s74 + $0x38] sm:$0xff]
    %v108 = vld [vmem:[%s74 + $0x40] sm:$0xff]
    %v109 = vld [vmem:[%s74 + $0x48] sm:$0xff]
    %v110 = vld [vmem:[%s74 + $0x50] sm:$0xff]
    %v111 = vld [vmem:[%s74 + $0x58] sm:$0xff]
    %v112 = vld [vmem:[%s74 + $0x60] sm:$0xff]
    %v113 = vld [vmem:[%s74 + $0x68] sm:$0xff]
    %v114 = vld [vmem:[%s74 + $0x70] sm:$0xff]
    %v115 = vld [vmem:[%s74 + $0x78] sm:$0xff]
    %v116 = vld [vmem:[%s74 + $0x80] sm:$0xff]
    %v117 = vld [vmem:[%s74 + $0x88] sm:$0xff]
    %v118 = vld [vmem:[%s74 + $0x90] sm:$0xff]
    %v119 = vld [vmem:[%s74 + $0x98] sm:$0xff]
    %v120 = vld [vmem:[%s74 + $0xa0] sm:$0xff]
    %v121 = vld [vmem:[%s74 + $0xa8] sm:$0xff]
    %v122 = vld [vmem:[%s74 + $0xb0] sm:$0xff]
    %v123 = vld [vmem:[%s74 + $0xb8] sm:$0xff]
    %v124 = vld [vmem:[%s74 + $0xc0] sm:$0xff]
    %v125 = vld [vmem:[%s74 + $0xc8] sm:$0xff]
    %v126 = vld [vmem:[%s74 + $0xd0] sm:$0xff]
    %v127 = vld [vmem:[%s74 + $0xd8] sm:$0xff]
    %v128 = vld [vmem:[%s74 + $0xe0] sm:$0xff]
    %v129 = vld [vmem:[%s74 + $0xe8] sm:$0xff]
    %v130 = vld [vmem:[%s74 + $0xf0] sm:$0xff]
    %v131 = vld [vmem:[%s74 + $0xf8] sm:$0xff]
    %v132 = vld [vmem:[%s90] sm:$0xff]
    %v133 = vld [vmem:[%s90 + $0x8] sm:$0xff]
    %v134 = vld [vmem:[%s90 + $0x10] sm:$0xff]
    %v135 = vld [vmem:[%s90 + $0x18] sm:$0xff]
    %v136 = vld [vmem:[%s90 + $0x20] sm:$0xff]
    %v137 = vld [vmem:[%s90 + $0x28] sm:$0xff]
    %v138 = vld [vmem:[%s90 + $0x30] sm:$0xff]
    %v139 = vld [vmem:[%s90 + $0x38] sm:$0xff]
    %v140 = vld [vmem:[%s90 + $0x40] sm:$0xff]
    %v141 = vld [vmem:[%s90 + $0x48] sm:$0xff]
    %v142 = vld [vmem:[%s90 + $0x50] sm:$0xff]
    %v143 = vld [vmem:[%s90 + $0x58] sm:$0xff]
    %v144 = vld [vmem:[%s90 + $0x60] sm:$0xff]
    %v145 = vld [vmem:[%s90 + $0x68] sm:$0xff]
    %v146 = vld [vmem:[%s90 + $0x70] sm:$0xff]
    %v147 = vld [vmem:[%s90 + $0x78] sm:$0xff]
    %v148 = vld [vmem:[%s90 + $0x80] sm:$0xff]
    %v149 = vld [vmem:[%s90 + $0x88] sm:$0xff]
    %v150 = vld [vmem:[%s90 + $0x90] sm:$0xff]
    %v151 = vld [vmem:[%s90 + $0x98] sm:$0xff]
    %v152 = vld [vmem:[%s90 + $0xa0] sm:$0xff]
    %v153 = vld [vmem:[%s90 + $0xa8] sm:$0xff]
    %v154 = vld [vmem:[%s90 + $0xb0] sm:$0xff]
    %v155 = vld [vmem:[%s90 + $0xb8] sm:$0xff]
    %v156 = vld [vmem:[%s90 + $0xc0] sm:$0xff]
    %v157 = vld [vmem:[%s90 + $0xc8] sm:$0xff]
    %v158 = vld [vmem:[%s90 + $0xd0] sm:$0xff]
    %v159 = vld [vmem:[%s90 + $0xd8] sm:$0xff]
    %v160 = vld [vmem:[%s90 + $0xe0] sm:$0xff]
    %v161 = vld [vmem:[%s90 + $0xe8] sm:$0xff]
    %v162 = vld [vmem:[%s90 + $0xf0] sm:$0xff]
    %v163 = vld [vmem:[%s90 + $0xf8] sm:$0xff]
    %v164 = vld [vmem:[%s82] sm:$0xff]
    %v165 = vld [vmem:[%s82 + $0x8] sm:$0xff]
    %v166 = vld [vmem:[%s82 + $0x10] sm:$0xff]
    %v167 = vld [vmem:[%s82 + $0x18] sm:$0xff]
    %v168 = vld [vmem:[%s82 + $0x20] sm:$0xff]
    %v169 = vld [vmem:[%s82 + $0x28] sm:$0xff]
    %v170 = vld [vmem:[%s82 + $0x30] sm:$0xff]
    %v171 = vld [vmem:[%s82 + $0x38] sm:$0xff]
    %v172 = vld [vmem:[%s82 + $0x40] sm:$0xff]
    %v173 = vld [vmem:[%s82 + $0x48] sm:$0xff]
    %v174 = vld [vmem:[%s82 + $0x50] sm:$0xff]
    %v175 = vld [vmem:[%s82 + $0x58] sm:$0xff]
    %v176 = vld [vmem:[%s82 + $0x60] sm:$0xff]
    %v177 = vld [vmem:[%s82 + $0x68] sm:$0xff]
    %v178 = vld [vmem:[%s82 + $0x70] sm:$0xff]
    %v179 = vld [vmem:[%s82 + $0x78] sm:$0xff]
    %v180 = vld [vmem:[%s82 + $0x80] sm:$0xff]
    %v181 = vld [vmem:[%s82 + $0x88] sm:$0xff]
    %v182 = vld [vmem:[%s82 + $0x90] sm:$0xff]
    %v183 = vld [vmem:[%s82 + $0x98] sm:$0xff]
    %v184 = vld [vmem:[%s82 + $0xa0] sm:$0xff]
    %v185 = vld [vmem:[%s82 + $0xa8] sm:$0xff]
    %v186 = vld [vmem:[%s82 + $0xb0] sm:$0xff]
    %v187 = vld [vmem:[%s82 + $0xb8] sm:$0xff]
    %v188 = vld [vmem:[%s82 + $0xc0] sm:$0xff]
    %v189 = vld [vmem:[%s82 + $0xc8] sm:$0xff]
    %v190 = vld [vmem:[%s82 + $0xd0] sm:$0xff]
    %v191 = vld [vmem:[%s82 + $0xd8] sm:$0xff]
    %v192 = vld [vmem:[%s82 + $0xe0] sm:$0xff]
    %v193 = vld [vmem:[%s82 + $0xe8] sm:$0xff]
    %v194 = vld [vmem:[%s82 + $0xf0] sm:$0xff]
    %v195 = vld [vmem:[%s82 + $0xf8] sm:$0xff]
    %v196 = vsub.f32 %v100, %v132
    %v197 = vsub.f32 %v101, %v133
    %v198 = vsub.f32 %v102, %v134
    %v199 = vsub.f32 %v103, %v135
    %v200 = vsub.f32 %v104, %v136
    %v201 = vsub.f32 %v105, %v137
    %v202 = vsub.f32 %v106, %v138
    %v203 = vsub.f32 %v107, %v139
    %v204 = vsub.f32 %v108, %v140
    %v205 = vsub.f32 %v109, %v141
    %v206 = vsub.f32 %v110, %v142
    %v207 = vsub.f32 %v111, %v143
    %v208 = vsub.f32 %v112, %v144
    %v209 = vsub.f32 %v113, %v145
    %v210 = vsub.f32 %v114, %v146
    %v211 = vsub.f32 %v115, %v147
    %v212 = vsub.f32 %v116, %v148
    %v213 = vsub.f32 %v117, %v149
    %v214 = vsub.f32 %v118, %v150
    %v215 = vsub.f32 %v119, %v151
    %v216 = vsub.f32 %v120, %v152
    %v217 = vsub.f32 %v121, %v153
    %v218 = vsub.f32 %v122, %v154
    %v219 = vsub.f32 %v123, %v155
    %v220 = vsub.f32 %v124, %v156
    %v221 = vsub.f32 %v125, %v157
    %v222 = vsub.f32 %v126, %v158
    %v223 = vsub.f32 %v127, %v159
    %v224 = vsub.f32 %v128, %v160
    %v225 = vsub.f32 %v129, %v161
    %v226 = vsub.f32 %v130, %v162
    %v227 = vsub.f32 %v131, %v163
    %v228 = vld [vmem:[#allocation2] sm:$0x1]
    %v229 = vmul.f32 %v196, %v196
    %v230 = vmul.f32 %v197, %v197
    %v231 = vmul.f32 %v198, %v198
    %v232 = vmul.f32 %v199, %v199
    %v233 = vmul.f32 %v200, %v200
    %v234 = vmul.f32 %v201, %v201
    %v235 = vmul.f32 %v202, %v202
    %v236 = vmul.f32 %v203, %v203
    %v237 = vmul.f32 %v204, %v204
    %v238 = vmul.f32 %v205, %v205
    %v239 = vmul.f32 %v206, %v206
    %v240 = vmul.f32 %v207, %v207
    %v241 = vmul.f32 %v208, %v208
    %v242 = vmul.f32 %v209, %v209
    %v243 = vmul.f32 %v210, %v210
    %v244 = vmul.f32 %v211, %v211
    %v245 = vmul.f32 %v212, %v212
    %v246 = vmul.f32 %v213, %v213
    %v247 = vmul.f32 %v214, %v214
    %v248 = vmul.f32 %v215, %v215
    %v249 = vmul.f32 %v216, %v216
    %v250 = vmul.f32 %v217, %v217
    %v251 = vmul.f32 %v218, %v218
    %v252 = vmul.f32 %v219, %v219
    %v253 = vmul.f32 %v220, %v220
    %v254 = vmul.f32 %v221, %v221
    %v255 = vmul.f32 %v222, %v222
    %v256 = vmul.f32 %v223, %v223
    %v257 = vmul.f32 %v224, %v224
    %v258 = vmul.f32 %v225, %v225
    %v259 = vmul.f32 %v226, %v226
    %v260 = vmul.f32 %v227, %v227
    %vm261 = vcmask 523264
    %v262 = vsel %vm261, %v229, 0.0
    %v263 = vsel %vm261, %v230, 0.0
    %v264 = vadd.f32 %v262, %v263
    %v265 = vsel %vm261, %v231, 0.0
    %v266 = vadd.f32 %v264, %v265
    %v267 = vsel %vm261, %v232, 0.0
    %v268 = vadd.f32 %v266, %v267
    %v269 = vsel %vm261, %v233, 0.0
    %v270 = vadd.f32 %v268, %v269
    %v271 = vsel %vm261, %v234, 0.0
    %v272 = vadd.f32 %v270, %v271
    %v273 = vsel %vm261, %v235, 0.0
    %v274 = vadd.f32 %v272, %v273
    %v275 = vsel %vm261, %v236, 0.0
    %v276 = vadd.f32 %v274, %v275
    %v277 = vsel %vm261, %v237, 0.0
    %v278 = vadd.f32 %v276, %v277
    %v279 = vsel %vm261, %v238, 0.0
    %v280 = vadd.f32 %v278, %v279
    %v281 = vsel %vm261, %v239, 0.0
    %v282 = vadd.f32 %v280, %v281
    %v283 = vsel %vm261, %v240, 0.0
    %v284 = vadd.f32 %v282, %v283
    %v285 = vsel %vm261, %v241, 0.0
    %v286 = vadd.f32 %v284, %v285
    %v287 = vsel %vm261, %v242, 0.0
    %v288 = vadd.f32 %v286, %v287
    %v289 = vsel %vm261, %v243, 0.0
    %v290 = vadd.f32 %v288, %v289
    %v291 = vsel %vm261, %v244, 0.0
    %v292 = vadd.f32 %v290, %v291
    %v293 = vsel %vm261, %v245, 0.0
    %v294 = vadd.f32 %v292, %v293
    %v295 = vsel %vm261, %v246, 0.0
    %v296 = vadd.f32 %v294, %v295
    %v297 = vsel %vm261, %v247, 0.0
    %v298 = vadd.f32 %v296, %v297
    %v299 = vsel %vm261, %v248, 0.0
    %v300 = vadd.f32 %v298, %v299
    %v301 = vsel %vm261, %v249, 0.0
    %v302 = vadd.f32 %v300, %v301
    %v303 = vsel %vm261, %v250, 0.0
    %v304 = vadd.f32 %v302, %v303
    %v305 = vsel %vm261, %v251, 0.0
    %v306 = vadd.f32 %v304, %v305
    %v307 = vsel %vm261, %v252, 0.0
    %v308 = vadd.f32 %v306, %v307
    %v309 = vsel %vm261, %v253, 0.0
    %v310 = vadd.f32 %v308, %v309
    %v311 = vsel %vm261, %v254, 0.0
    %v312 = vadd.f32 %v310, %v311
    %v313 = vsel %vm261, %v255, 0.0
    %v314 = vadd.f32 %v312, %v313
    %v315 = vsel %vm261, %v256, 0.0
    %v316 = vadd.f32 %v314, %v315
    %v317 = vsel %vm261, %v257, 0.0
    %v318 = vadd.f32 %v316, %v317
    %v319 = vsel %vm261, %v258, 0.0
    %v320 = vadd.f32 %v318, %v319
    %v321 = vsel %vm261, %v259, 0.0
    %v322 = vadd.f32 %v320, %v321
    %v323 = vsel %vm261, %v260, 0.0
    %v324 = vadd.f32 %v322, %v323
    %v325 = vrot.slane %v324, 4
    %v326 = vadd.f32 %v324, %v325
    %v327 = vrot.slane %v326, 2
    %v328 = vadd.f32 %v326, %v327
    %v329 = vrot.slane %v328, 1
    %v330 = vadd.f32 %v328, %v329
    %v331 = vadd.f32 %v228, %v330
    %vm332 = vcmask 516096
    %333 = vst.msk [vmem:[#allocation2] sm:$0x1] %vm332, %v331
    %v334 = vld [vmem:[%s3] sm:$0xff]
    %v335 = vld [vmem:[%s3 + $0x8] sm:$0xff]
    %v336 = vld [vmem:[%s3 + $0x10] sm:$0xff]
    %v337 = vld [vmem:[%s3 + $0x18] sm:$0xff]
    %v338 = vld [vmem:[%s3 + $0x20] sm:$0xff]
    %v339 = vld [vmem:[%s3 + $0x28] sm:$0xff]
    %v340 = vld [vmem:[%s3 + $0x30] sm:$0xff]
    %v341 = vld [vmem:[%s3 + $0x38] sm:$0xff]
    %v342 = vld [vmem:[%s4] sm:$0xff]
    %v343 = vld [vmem:[%s4 + $0x8] sm:$0xff]
    %v344 = vld [vmem:[%s4 + $0x10] sm:$0xff]
    %v345 = vld [vmem:[%s4 + $0x18] sm:$0xff]
    %v346 = vld [vmem:[%s4 + $0x20] sm:$0xff]
    %v347 = vld [vmem:[%s4 + $0x28] sm:$0xff]
    %v348 = vld [vmem:[%s4 + $0x30] sm:$0xff]
    %v349 = vld [vmem:[%s4 + $0x38] sm:$0xff]
    %v350 = vld [vmem:[%s4 + $0x40] sm:$0xff]
    %v351 = vld [vmem:[%s4 + $0x48] sm:$0xff]
    %v352 = vld [vmem:[%s4 + $0x50] sm:$0xff]
    %v353 = vld [vmem:[%s4 + $0x58] sm:$0xff]
    %v354 = vld [vmem:[%s4 + $0x60] sm:$0xff]
    %v355 = vld [vmem:[%s4 + $0x68] sm:$0xff]
    %v356 = vld [vmem:[%s4 + $0x70] sm:$0xff]
    %v357 = vld [vmem:[%s4 + $0x78] sm:$0xff]
    %358 = vmatprep.subr.mxu0 0.0
    %359 = vmatpush1.msra.mxu0 %v342
    %360 = vmatprep.subr.mxu0 0.0
    %361 = vmatpush1.msra.mxu0 %v343
    %362 = vmatprep.subr.mxu0 0.0
    %363 = vmatpush1.msra.mxu0 %v344
    %364 = vmatprep.subr.mxu0 0.0
    %365 = vmatpush1.msra.mxu0 %v345
    %366 = vmatprep.subr.mxu0 0.0
    %367 = vmatpush1.msra.mxu0 %v346
    %368 = vmatprep.subr.mxu0 0.0
    %369 = vmatpush1.msra.mxu0 %v347
    %370 = vmatprep.subr.mxu0 0.0
    %371 = vmatpush1.msra.mxu0 %v348
    %372 = vmatprep.subr.mxu0 0.0
    %373 = vmatpush1.msra.mxu0 %v349
    %374 = vmatprep.subr.mxu0 0.0
    %375 = vmatpush1.msra.mxu0 %v350
    %376 = vmatprep.subr.mxu0 0.0
    %377 = vmatpush1.msra.mxu0 %v351
    %378 = vmatprep.subr.mxu0 0.0
    %379 = vmatpush1.msra.mxu0 %v352
    %380 = vmatprep.subr.mxu0 0.0
    %381 = vmatpush1.msra.mxu0 %v353
    %382 = vmatprep.subr.mxu0 0.0
    %383 = vmatpush1.msra.mxu0 %v354
    %384 = vmatprep.subr.mxu0 0.0
    %385 = vmatpush1.msra.mxu0 %v355
    %386 = vmatprep.subr.mxu0 0.0
    %387 = vmatpush1.msra.mxu0 %v356
    %388 = vmatprep.subr.mxu0 0.0
    %389 = vmatpush1.msra.mxu0 %v357
    %390 = vmatprep.subr.mxu0 0.0
    %391 = vmatpush1.msra.mxu0 0.0
    %392 = vmatprep.subr.mxu0 0.0
    %393 = vmatpush1.msra.mxu0 0.0
    %394 = vmatprep.subr.mxu0 0.0
    %395 = vmatpush1.msra.mxu0 0.0
    %396 = vmatprep.subr.mxu0 0.0
    %397 = vmatpush1.msra.mxu0 0.0
    %398 = vmatprep.subr.mxu0 0.0
    %399 = vmatpush1.msra.mxu0 0.0
    %400 = vmatprep.subr.mxu0 0.0
    %401 = vmatpush1.msra.mxu0 0.0
    %402 = vmatprep.subr.mxu0 0.0
    %403 = vmatpush1.msra.mxu0 0.0
    %404 = vmatprep.subr.mxu0 0.0
    %405 = vmatpush1.msra.mxu0 0.0
    %406 = vmatprep.subr.mxu0 0.0
    %407 = vmatpush1.msra.mxu0 0.0
    %408 = vmatprep.subr.mxu0 0.0
    %409 = vmatpush1.msra.mxu0 0.0
    %410 = vmatprep.subr.mxu0 0.0
    %411 = vmatpush1.msra.mxu0 0.0
    %412 = vmatprep.subr.mxu0 0.0
    %413 = vmatpush1.msra.mxu0 0.0
    %414 = vmatprep.subr.mxu0 0.0
    %415 = vmatpush1.msra.mxu0 0.0
    %416 = vmatprep.subr.mxu0 0.0
    %417 = vmatpush1.msra.mxu0 0.0
    %418 = vmatprep.subr.mxu0 0.0
    %419 = vmatpush1.msra.mxu0 0.0
    %420 = vmatprep.subr.mxu0 0.0
    %421 = vmatpush1.msra.mxu0 0.0
    %422 = vmatprep.mubr.f32.mxu0 0.0
    %423 = vmatmul.mubr.f32.gmra.mrb[0].mxu0 %v164
    %v424 = vpop.f32.mrb[0].mxu0
    %v425 = vadd.f32 0.0, %v424
    %v426 = vpop.f32.mrb[0].mxu0
    %427 = vmatprep.mubr.f32.mxu0 0.0
    %428 = vmatmul.mubr.f32.gmra.mrb[0].mxu0 %v165
    %v429 = vpop.f32.mrb[0].mxu0
    %v430 = vadd.f32 0.0, %v429
    %v431 = vpop.f32.mrb[0].mxu0
    %432 = vmatprep.mubr.f32.mxu0 0.0
    %433 = vmatmul.mubr.f32.gmra.mrb[0].mxu0 %v166
    %v434 = vpop.f32.mrb[0].mxu0
    %v435 = vadd.f32 0.0, %v434
    %v436 = vpop.f32.mrb[0].mxu0
    %437 = vmatprep.mubr.f32.mxu0 0.0
    %438 = vmatmul.mubr.f32.gmra.mrb[0].mxu0 %v167
    %v439 = vpop.f32.mrb[0].mxu0
    %v440 = vadd.f32 0.0, %v439
    %v441 = vpop.f32.mrb[0].mxu0
    %442 = vmatprep.mubr.f32.mxu0 0.0
    %443 = vmatmul.mubr.f32.gmra.mrb[0].mxu0 %v168
    %v444 = vpop.f32.mrb[0].mxu0
    %v445 = vadd.f32 0.0, %v444
    %v446 = vpop.f32.mrb[0].mxu0
    %447 = vmatprep.mubr.f32.mxu0 0.0
    %448 = vmatmul.mubr.f32.gmra.mrb[0].mxu0 %v169
    %v449 = vpop.f32.mrb[0].mxu0
    %v450 = vadd.f32 0.0, %v449
    %v451 = vpop.f32.mrb[0].mxu0
    %452 = vmatprep.mubr.f32.mxu0 0.0
    %453 = vmatmul.mubr.f32.gmra.mrb[0].mxu0 %v170
    %v454 = vpop.f32.mrb[0].mxu0
    %v455 = vadd.f32 0.0, %v454
    %v456 = vpop.f32.mrb[0].mxu0
    %457 = vmatprep.mubr.f32.mxu0 0.0
    %458 = vmatmul.mubr.f32.gmra.mrb[0].mxu0 %v171
    %v459 = vpop.f32.mrb[0].mxu0
    %v460 = vadd.f32 0.0, %v459
    %v461 = vpop.f32.mrb[0].mxu0
    %462 = vmatprep.mubr.f32.mxu0 0.0
    %463 = vmatmul.mubr.f32.gmra.mrb[0].mxu0 %v172
    %v464 = vpop.f32.mrb[0].mxu0
    %v465 = vadd.f32 0.0, %v464
    %v466 = vpop.f32.mrb[0].mxu0
    %467 = vmatprep.mubr.f32.mxu0 0.0
    %468 = vmatmul.mubr.f32.gmra.mrb[0].mxu0 %v173
    %v469 = vpop.f32.mrb[0].mxu0
    %v470 = vadd.f32 0.0, %v469
    %v471 = vpop.f32.mrb[0].mxu0
    %472 = vmatprep.mubr.f32.mxu0 0.0
    %473 = vmatmul.mubr.f32.gmra.mrb[0].mxu0 %v174
    %v474 = vpop.f32.mrb[0].mxu0
    %v475 = vadd.f32 0.0, %v474
    %v476 = vpop.f32.mrb[0].mxu0
    %477 = vmatprep.mubr.f32.mxu0 0.0
    %478 = vmatmul.mubr.f32.gmra.mrb[0].mxu0 %v175
    %v479 = vpop.f32.mrb[0].mxu0
    %v480 = vadd.f32 0.0, %v479
    %v481 = vpop.f32.mrb[0].mxu0
    %482 = vmatprep.mubr.f32.mxu0 0.0
    %483 = vmatmul.mubr.f32.gmra.mrb[0].mxu0 %v176
    %v484 = vpop.f32.mrb[0].mxu0
    %v485 = vadd.f32 0.0, %v484
    %v486 = vpop.f32.mrb[0].mxu0
    %487 = vmatprep.mubr.f32.mxu0 0.0
    %488 = vmatmul.mubr.f32.gmra.mrb[0].mxu0 %v177
    %v489 = vpop.f32.mrb[0].mxu0
    %v490 = vadd.f32 0.0, %v489
    %v491 = vpop.f32.mrb[0].mxu0
    %492 = vmatprep.mubr.f32.mxu0 0.0
    %493 = vmatmul.mubr.f32.gmra.mrb[0].mxu0 %v178
    %v494 = vpop.f32.mrb[0].mxu0
    %v495 = vadd.f32 0.0, %v494
    %v496 = vpop.f32.mrb[0].mxu0
    %497 = vmatprep.mubr.f32.mxu0 0.0
    %498 = vmatmul.mubr.f32.gmra.mrb[0].mxu0 %v179
    %v499 = vpop.f32.mrb[0].mxu0
    %v500 = vadd.f32 0.0, %v499
    %v501 = vpop.f32.mrb[0].mxu0
    %502 = vmatprep.mubr.f32.mxu0 0.0
    %503 = vmatmul.mubr.f32.gmra.mrb[0].mxu0 %v180
    %v504 = vpop.f32.mrb[0].mxu0
    %v505 = vadd.f32 0.0, %v504
    %v506 = vpop.f32.mrb[0].mxu0
    %507 = vmatprep.mubr.f32.mxu0 0.0
    %508 = vmatmul.mubr.f32.gmra.mrb[0].mxu0 %v181
    %v509 = vpop.f32.mrb[0].mxu0
    %v510 = vadd.f32 0.0, %v509
    %v511 = vpop.f32.mrb[0].mxu0
    %512 = vmatprep.mubr.f32.mxu0 0.0
    %513 = vmatmul.mubr.f32.gmra.mrb[0].mxu0 %v182
    %v514 = vpop.f32.mrb[0].mxu0
    %v515 = vadd.f32 0.0, %v514
    %v516 = vpop.f32.mrb[0].mxu0
    %517 = vmatprep.mubr.f32.mxu0 0.0
    %518 = vmatmul.mubr.f32.gmra.mrb[0].mxu0 %v183
    %v519 = vpop.f32.mrb[0].mxu0
    %v520 = vadd.f32 0.0, %v519
    %v521 = vpop.f32.mrb[0].mxu0
    %522 = vmatprep.mubr.f32.mxu0 0.0
    %523 = vmatmul.mubr.f32.gmra.mrb[0].mxu0 %v184
    %v524 = vpop.f32.mrb[0].mxu0
    %v525 = vadd.f32 0.0, %v524
    %v526 = vpop.f32.mrb[0].mxu0
    %527 = vmatprep.mubr.f32.mxu0 0.0
    %528 = vmatmul.mubr.f32.gmra.mrb[0].mxu0 %v185
    %v529 = vpop.f32.mrb[0].mxu0
    %v530 = vadd.f32 0.0, %v529
    %v531 = vpop.f32.mrb[0].mxu0
    %532 = vmatprep.mubr.f32.mxu0 0.0
    %533 = vmatmul.mubr.f32.gmra.mrb[0].mxu0 %v186
    %v534 = vpop.f32.mrb[0].mxu0
    %v535 = vadd.f32 0.0, %v534
    %v536 = vpop.f32.mrb[0].mxu0
    %537 = vmatprep.mubr.f32.mxu0 0.0
    %538 = vmatmul.mubr.f32.gmra.mrb[0].mxu0 %v187
    %v539 = vpop.f32.mrb[0].mxu0
    %v540 = vadd.f32 0.0, %v539
    %v541 = vpop.f32.mrb[0].mxu0
    %542 = vmatprep.mubr.f32.mxu0 0.0
    %543 = vmatmul.mubr.f32.gmra.mrb[0].mxu0 %v188
    %v544 = vpop.f32.mrb[0].mxu0
    %v545 = vadd.f32 0.0, %v544
    %v546 = vpop.f32.mrb[0].mxu0
    %547 = vmatprep.mubr.f32.mxu0 0.0
    %548 = vmatmul.mubr.f32.gmra.mrb[0].mxu0 %v189
    %v549 = vpop.f32.mrb[0].mxu0
    %v550 = vadd.f32 0.0, %v549
    %v551 = vpop.f32.mrb[0].mxu0
    %552 = vmatprep.mubr.f32.mxu0 0.0
    %553 = vmatmul.mubr.f32.gmra.mrb[0].mxu0 %v190
    %v554 = vpop.f32.mrb[0].mxu0
    %v555 = vadd.f32 0.0, %v554
    %v556 = vpop.f32.mrb[0].mxu0
    %557 = vmatprep.mubr.f32.mxu0 0.0
    %558 = vmatmul.mubr.f32.gmra.mrb[0].mxu0 %v191
    %v559 = vpop.f32.mrb[0].mxu0
    %v560 = vadd.f32 0.0, %v559
    %v561 = vpop.f32.mrb[0].mxu0
    %562 = vmatprep.mubr.f32.mxu0 0.0
    %563 = vmatmul.mubr.f32.gmra.mrb[0].mxu0 %v192
    %v564 = vpop.f32.mrb[0].mxu0
    %v565 = vadd.f32 0.0, %v564
    %v566 = vpop.f32.mrb[0].mxu0
    %567 = vmatprep.mubr.f32.mxu0 0.0
    %568 = vmatmul.mubr.f32.gmra.mrb[0].mxu0 %v193
    %v569 = vpop.f32.mrb[0].mxu0
    %v570 = vadd.f32 0.0, %v569
    %v571 = vpop.f32.mrb[0].mxu0
    %572 = vmatprep.mubr.f32.mxu0 0.0
    %573 = vmatmul.mubr.f32.gmra.mrb[0].mxu0 %v194
    %v574 = vpop.f32.mrb[0].mxu0
    %v575 = vadd.f32 0.0, %v574
    %v576 = vpop.f32.mrb[0].mxu0
    %577 = vmatprep.mubr.f32.mxu0 0.0
    %578 = vmatmul.mubr.f32.gmra.mrb[0].mxu0 %v195
    %v579 = vpop.f32.mrb[0].mxu0
    %v580 = vadd.f32 0.0, %v579
    %v581 = vpop.f32.mrb[0].mxu0
    %582 = vdwg.mxu0
    %v584 = vsel %vm261, %v100, 0
    %v587 = vsel %vm261, %v101, 0
    %v590 = vsel %vm261, %v102, 0
    %v593 = vsel %vm261, %v103, 0
    %v596 = vsel %vm261, %v104, 0
    %v599 = vsel %vm261, %v105, 0
    %v602 = vsel %vm261, %v106, 0
    %v605 = vsel %vm261, %v107, 0
    %v608 = vsel %vm261, %v108, 0
    %v611 = vsel %vm261, %v109, 0
    %v614 = vsel %vm261, %v110, 0
    %v617 = vsel %vm261, %v111, 0
    %v620 = vsel %vm261, %v112, 0
    %v623 = vsel %vm261, %v113, 0
    %v626 = vsel %vm261, %v114, 0
    %v629 = vsel %vm261, %v115, 0
    %v632 = vsel %vm261, %v116, 0
    %v635 = vsel %vm261, %v117, 0
    %v638 = vsel %vm261, %v118, 0
    %v641 = vsel %vm261, %v119, 0
    %v644 = vsel %vm261, %v120, 0
    %v647 = vsel %vm261, %v121, 0
    %v650 = vsel %vm261, %v122, 0
    %v653 = vsel %vm261, %v123, 0
    %v656 = vsel %vm261, %v124, 0
    %v659 = vsel %vm261, %v125, 0
    %v662 = vsel %vm261, %v126, 0
    %v665 = vsel %vm261, %v127, 0
    %v668 = vsel %vm261, %v128, 0
    %v671 = vsel %vm261, %v129, 0
    %v674 = vsel %vm261, %v130, 0
    %v677 = vsel %vm261, %v131, 0
    %679 = vmatprep.subr.mxu0 0.0
    %680 = vmatpush1.msra.mxu0 %v334
    %681 = vmatprep.subr.mxu0 0.0
    %682 = vmatpush1.msra.mxu0 %v335
    %683 = vmatprep.subr.mxu0 0.0
    %684 = vmatpush1.msra.mxu0 %v336
    %685 = vmatprep.subr.mxu0 0.0
    %686 = vmatpush1.msra.mxu0 %v337
    %687 = vmatprep.subr.mxu0 0.0
    %688 = vmatpush1.msra.mxu0 %v338
    %689 = vmatprep.subr.mxu0 0.0
    %690 = vmatpush1.msra.mxu0 %v339
    %691 = vmatprep.subr.mxu0 0.0
    %692 = vmatpush1.msra.mxu0 %v340
    %693 = vmatprep.subr.mxu0 0.0
    %694 = vmatpush1.msra.mxu0 %v341
    %695 = vmatprep.subr.mxu0 0.0
    %696 = vmatpush1.msra.mxu0 0.0
    %697 = vmatprep.subr.mxu0 0.0
    %698 = vmatpush1.msra.mxu0 0.0
    %699 = vmatprep.subr.mxu0 0.0
    %700 = vmatpush1.msra.mxu0 0.0
    %701 = vmatprep.subr.mxu0 0.0
    %702 = vmatpush1.msra.mxu0 0.0
    %703 = vmatprep.subr.mxu0 0.0
    %704 = vmatpush1.msra.mxu0 0.0
    %705 = vmatprep.subr.mxu0 0.0
    %706 = vmatpush1.msra.mxu0 0.0
    %707 = vmatprep.subr.mxu0 0.0
    %708 = vmatpush1.msra.mxu0 0.0
    %709 = vmatprep.subr.mxu0 0.0
    %710 = vmatpush1.msra.mxu0 0.0
    %711 = vmatprep.subr.mxu0 0.0
    %712 = vmatpush1.msra.mxu0 0.0
    %713 = vmatprep.subr.mxu0 0.0
    %714 = vmatpush1.msra.mxu0 0.0
    %715 = vmatprep.subr.mxu0 0.0
    %716 = vmatpush1.msra.mxu0 0.0
    %717 = vmatprep.subr.mxu0 0.0
    %718 = vmatpush1.msra.mxu0 0.0
    %719 = vmatprep.subr.mxu0 0.0
    %720 = vmatpush1.msra.mxu0 0.0
    %721 = vmatprep.subr.mxu0 0.0
    %722 = vmatpush1.msra.mxu0 0.0
    %723 = vmatprep.subr.mxu0 0.0
    %724 = vmatpush1.msra.mxu0 0.0
    %725 = vmatprep.subr.mxu0 0.0
    %726 = vmatpush1.msra.mxu0 0.0
    %727 = vmatprep.subr.mxu0 0.0
    %728 = vmatpush1.msra.mxu0 0.0
    %729 = vmatprep.subr.mxu0 0.0
    %730 = vmatpush1.msra.mxu0 0.0
    %731 = vmatprep.subr.mxu0 0.0
    %732 = vmatpush1.msra.mxu0 0.0
    %733 = vmatprep.subr.mxu0 0.0
    %734 = vmatpush1.msra.mxu0 0.0
    %735 = vmatprep.subr.mxu0 0.0
    %736 = vmatpush1.msra.mxu0 0.0
    %737 = vmatprep.subr.mxu0 0.0
    %738 = vmatpush1.msra.mxu0 0.0
    %739 = vmatprep.subr.mxu0 0.0
    %740 = vmatpush1.msra.mxu0 0.0
    %741 = vmatprep.subr.mxu0 0.0
    %742 = vmatpush1.msra.mxu0 0.0
    %743 = vmatprep.mubr.f32.mxu0 0.0
    %744 = vmatmul.mubr.f32.gmra.mrb[0].mxu0 %v584
    %v745 = vpop.f32.mrb[0].mxu0
    %v746 = vadd.f32 %v425, %v745
    %v747 = vpop.f32.mrb[0].mxu0
    %748 = vmatprep.mubr.f32.mxu0 0.0
    %749 = vmatmul.mubr.f32.gmra.mrb[0].mxu0 %v587
    %v750 = vpop.f32.mrb[0].mxu0
    %v751 = vadd.f32 %v430, %v750
    %v752 = vpop.f32.mrb[0].mxu0
    %753 = vmatprep.mubr.f32.mxu0 0.0
    %754 = vmatmul.mubr.f32.gmra.mrb[0].mxu0 %v590
    %v755 = vpop.f32.mrb[0].mxu0
    %v756 = vadd.f32 %v435, %v755
    %v757 = vpop.f32.mrb[0].mxu0
    %758 = vmatprep.mubr.f32.mxu0 0.0
    %759 = vmatmul.mubr.f32.gmra.mrb[0].mxu0 %v593
    %v760 = vpop.f32.mrb[0].mxu0
    %v761 = vadd.f32 %v440, %v760
    %v762 = vpop.f32.mrb[0].mxu0
    %763 = vmatprep.mubr.f32.mxu0 0.0
    %764 = vmatmul.mubr.f32.gmra.mrb[0].mxu0 %v596
    %v765 = vpop.f32.mrb[0].mxu0
    %v766 = vadd.f32 %v445, %v765
    %v767 = vpop.f32.mrb[0].mxu0
    %768 = vmatprep.mubr.f32.mxu0 0.0
    %769 = vmatmul.mubr.f32.gmra.mrb[0].mxu0 %v599
    %v770 = vpop.f32.mrb[0].mxu0
    %v771 = vadd.f32 %v450, %v770
    %v772 = vpop.f32.mrb[0].mxu0
    %773 = vmatprep.mubr.f32.mxu0 0.0
    %774 = vmatmul.mubr.f32.gmra.mrb[0].mxu0 %v602
    %v775 = vpop.f32.mrb[0].mxu0
    %v776 = vadd.f32 %v455, %v775
    %v777 = vpop.f32.mrb[0].mxu0
    %778 = vmatprep.mubr.f32.mxu0 0.0
    %779 = vmatmul.mubr.f32.gmra.mrb[0].mxu0 %v605
    %v780 = vpop.f32.mrb[0].mxu0
    %v781 = vadd.f32 %v460, %v780
    %v782 = vpop.f32.mrb[0].mxu0
    %783 = vmatprep.mubr.f32.mxu0 0.0
    %784 = vmatmul.mubr.f32.gmra.mrb[0].mxu0 %v608
    %v785 = vpop.f32.mrb[0].mxu0
    %v786 = vadd.f32 %v465, %v785
    %v787 = vpop.f32.mrb[0].mxu0
    %788 = vmatprep.mubr.f32.mxu0 0.0
    %789 = vmatmul.mubr.f32.gmra.mrb[0].mxu0 %v611
    %v790 = vpop.f32.mrb[0].mxu0
    %v791 = vadd.f32 %v470, %v790
    %v792 = vpop.f32.mrb[0].mxu0
    %793 = vmatprep.mubr.f32.mxu0 0.0
    %794 = vmatmul.mubr.f32.gmra.mrb[0].mxu0 %v614
    %v795 = vpop.f32.mrb[0].mxu0
    %v796 = vadd.f32 %v475, %v795
    %v797 = vpop.f32.mrb[0].mxu0
    %798 = vmatprep.mubr.f32.mxu0 0.0
    %799 = vmatmul.mubr.f32.gmra.mrb[0].mxu0 %v617
    %v800 = vpop.f32.mrb[0].mxu0
    %v801 = vadd.f32 %v480, %v800
    %v802 = vpop.f32.mrb[0].mxu0
    %803 = vmatprep.mubr.f32.mxu0 0.0
    %804 = vmatmul.mubr.f32.gmra.mrb[0].mxu0 %v620
    %v805 = vpop.f32.mrb[0].mxu0
    %v806 = vadd.f32 %v485, %v805
    %v807 = vpop.f32.mrb[0].mxu0
    %808 = vmatprep.mubr.f32.mxu0 0.0
    %809 = vmatmul.mubr.f32.gmra.mrb[0].mxu0 %v623
    %v810 = vpop.f32.mrb[0].mxu0
    %v811 = vadd.f32 %v490, %v810
    %v812 = vpop.f32.mrb[0].mxu0
    %813 = vmatprep.mubr.f32.mxu0 0.0
    %814 = vmatmul.mubr.f32.gmra.mrb[0].mxu0 %v626
    %v815 = vpop.f32.mrb[0].mxu0
    %v816 = vadd.f32 %v495, %v815
    %v817 = vpop.f32.mrb[0].mxu0
    %818 = vmatprep.mubr.f32.mxu0 0.0
    %819 = vmatmul.mubr.f32.gmra.mrb[0].mxu0 %v629
    %v820 = vpop.f32.mrb[0].mxu0
    %v821 = vadd.f32 %v500, %v820
    %v822 = vpop.f32.mrb[0].mxu0
    %823 = vmatprep.mubr.f32.mxu0 0.0
    %824 = vmatmul.mubr.f32.gmra.mrb[0].mxu0 %v632
    %v825 = vpop.f32.mrb[0].mxu0
    %v826 = vadd.f32 %v505, %v825
    %v827 = vpop.f32.mrb[0].mxu0
    %828 = vmatprep.mubr.f32.mxu0 0.0
    %829 = vmatmul.mubr.f32.gmra.mrb[0].mxu0 %v635
    %v830 = vpop.f32.mrb[0].mxu0
    %v831 = vadd.f32 %v510, %v830
    %v832 = vpop.f32.mrb[0].mxu0
    %833 = vmatprep.mubr.f32.mxu0 0.0
    %834 = vmatmul.mubr.f32.gmra.mrb[0].mxu0 %v638
    %v835 = vpop.f32.mrb[0].mxu0
    %v836 = vadd.f32 %v515, %v835
    %v837 = vpop.f32.mrb[0].mxu0
    %838 = vmatprep.mubr.f32.mxu0 0.0
    %839 = vmatmul.mubr.f32.gmra.mrb[0].mxu0 %v641
    %v840 = vpop.f32.mrb[0].mxu0
    %v841 = vadd.f32 %v520, %v840
    %v842 = vpop.f32.mrb[0].mxu0
    %843 = vmatprep.mubr.f32.mxu0 0.0
    %844 = vmatmul.mubr.f32.gmra.mrb[0].mxu0 %v644
    %v845 = vpop.f32.mrb[0].mxu0
    %v846 = vadd.f32 %v525, %v845
    %v847 = vpop.f32.mrb[0].mxu0
    %848 = vmatprep.mubr.f32.mxu0 0.0
    %849 = vmatmul.mubr.f32.gmra.mrb[0].mxu0 %v647
    %v850 = vpop.f32.mrb[0].mxu0
    %v851 = vadd.f32 %v530, %v850
    %v852 = vpop.f32.mrb[0].mxu0
    %853 = vmatprep.mubr.f32.mxu0 0.0
    %854 = vmatmul.mubr.f32.gmra.mrb[0].mxu0 %v650
    %v855 = vpop.f32.mrb[0].mxu0
    %v856 = vadd.f32 %v535, %v855
    %v857 = vpop.f32.mrb[0].mxu0
    %858 = vmatprep.mubr.f32.mxu0 0.0
    %859 = vmatmul.mubr.f32.gmra.mrb[0].mxu0 %v653
    %v860 = vpop.f32.mrb[0].mxu0
    %v861 = vadd.f32 %v540, %v860
    %v862 = vpop.f32.mrb[0].mxu0
    %863 = vmatprep.mubr.f32.mxu0 0.0
    %864 = vmatmul.mubr.f32.gmra.mrb[0].mxu0 %v656
    %v865 = vpop.f32.mrb[0].mxu0
    %v866 = vadd.f32 %v545, %v865
    %v867 = vpop.f32.mrb[0].mxu0
    %868 = vmatprep.mubr.f32.mxu0 0.0
    %869 = vmatmul.mubr.f32.gmra.mrb[0].mxu0 %v659
    %v870 = vpop.f32.mrb[0].mxu0
    %v871 = vadd.f32 %v550, %v870
    %v872 = vpop.f32.mrb[0].mxu0
    %873 = vmatprep.mubr.f32.mxu0 0.0
    %874 = vmatmul.mubr.f32.gmra.mrb[0].mxu0 %v662
    %v875 = vpop.f32.mrb[0].mxu0
    %v876 = vadd.f32 %v555, %v875
    %v877 = vpop.f32.mrb[0].mxu0
    %878 = vmatprep.mubr.f32.mxu0 0.0
    %879 = vmatmul.mubr.f32.gmra.mrb[0].mxu0 %v665
    %v880 = vpop.f32.mrb[0].mxu0
    %v881 = vadd.f32 %v560, %v880
    %v882 = vpop.f32.mrb[0].mxu0
    %883 = vmatprep.mubr.f32.mxu0 0.0
    %884 = vmatmul.mubr.f32.gmra.mrb[0].mxu0 %v668
    %v885 = vpop.f32.mrb[0].mxu0
    %v886 = vadd.f32 %v565, %v885
    %v887 = vpop.f32.mrb[0].mxu0
    %888 = vmatprep.mubr.f32.mxu0 0.0
    %889 = vmatmul.mubr.f32.gmra.mrb[0].mxu0 %v671
    %v890 = vpop.f32.mrb[0].mxu0
    %v891 = vadd.f32 %v570, %v890
    %v892 = vpop.f32.mrb[0].mxu0
    %893 = vmatprep.mubr.f32.mxu0 0.0
    %894 = vmatmul.mubr.f32.gmra.mrb[0].mxu0 %v674
    %v895 = vpop.f32.mrb[0].mxu0
    %v896 = vadd.f32 %v575, %v895
    %v897 = vpop.f32.mrb[0].mxu0
    %898 = vmatprep.mubr.f32.mxu0 0.0
    %899 = vmatmul.mubr.f32.gmra.mrb[0].mxu0 %v677
    %v900 = vpop.f32.mrb[0].mxu0
    %v901 = vadd.f32 %v580, %v900
    %v902 = vpop.f32.mrb[0].mxu0
    %903 = vdwg.mxu0
    %v904 = vld [vmem:[%s5] sm:$0x1]
    %v906 = vlaneseq
    %v907 = vshrl.u32 %v906, 7
    %v908 = vsub.s32 0, %v907
    %v909 = vrot.slane %v904, %v908
    %v911 = vsub.f32 %v746, %v909
    %v912 = vsub.f32 %v751, %v909
    %v913 = vsub.f32 %v756, %v909
    %v914 = vsub.f32 %v761, %v909
    %v915 = vsub.f32 %v766, %v909
    %v916 = vsub.f32 %v771, %v909
    %v917 = vsub.f32 %v776, %v909
    %v918 = vsub.f32 %v781, %v909
    %v919 = vsub.f32 %v786, %v909
    %v920 = vsub.f32 %v791, %v909
    %v921 = vsub.f32 %v796, %v909
    %v922 = vsub.f32 %v801, %v909
    %v923 = vsub.f32 %v806, %v909
    %v924 = vsub.f32 %v811, %v909
    %v925 = vsub.f32 %v816, %v909
    %v926 = vsub.f32 %v821, %v909
    %v927 = vsub.f32 %v826, %v909
    %v928 = vsub.f32 %v831, %v909
    %v929 = vsub.f32 %v836, %v909
    %v930 = vsub.f32 %v841, %v909
    %v931 = vsub.f32 %v846, %v909
    %v932 = vsub.f32 %v851, %v909
    %v933 = vsub.f32 %v856, %v909
    %v934 = vsub.f32 %v861, %v909
    %v935 = vsub.f32 %v866, %v909
    %v936 = vsub.f32 %v871, %v909
    %v937 = vsub.f32 %v876, %v909
    %v938 = vsub.f32 %v881, %v909
    %v939 = vsub.f32 %v886, %v909
    %v940 = vsub.f32 %v891, %v909
    %v941 = vsub.f32 %v896, %v909
    %v942 = vsub.f32 %v901, %v909
    %v943 = vld [vmem:[#allocation3] sm:$0x1]
    %v944 = vmul.f32 %v911, %v911
    %v945 = vmul.f32 %v912, %v912
    %v946 = vmul.f32 %v913, %v913
    %v947 = vmul.f32 %v914, %v914
    %v948 = vmul.f32 %v915, %v915
    %v949 = vmul.f32 %v916, %v916
    %v950 = vmul.f32 %v917, %v917
    %v951 = vmul.f32 %v918, %v918
    %v952 = vmul.f32 %v919, %v919
    %v953 = vmul.f32 %v920, %v920
    %v954 = vmul.f32 %v921, %v921
    %v955 = vmul.f32 %v922, %v922
    %v956 = vmul.f32 %v923, %v923
    %v957 = vmul.f32 %v924, %v924
    %v958 = vmul.f32 %v925, %v925
    %v959 = vmul.f32 %v926, %v926
    %v960 = vmul.f32 %v927, %v927
    %v961 = vmul.f32 %v928, %v928
    %v962 = vmul.f32 %v929, %v929
    %v963 = vmul.f32 %v930, %v930
    %v964 = vmul.f32 %v931, %v931
    %v965 = vmul.f32 %v932, %v932
    %v966 = vmul.f32 %v933, %v933
    %v967 = vmul.f32 %v934, %v934
    %v968 = vmul.f32 %v935, %v935
    %v969 = vmul.f32 %v936, %v936
    %v970 = vmul.f32 %v937, %v937
    %v971 = vmul.f32 %v938, %v938
    %v972 = vmul.f32 %v939, %v939
    %v973 = vmul.f32 %v940, %v940
    %v974 = vmul.f32 %v941, %v941
    %v975 = vmul.f32 %v942, %v942
    %v976 = vsel %vm261, %v944, 0.0
    %v977 = vsel %vm261, %v945, 0.0
    %v978 = vadd.f32 %v976, %v977
    %v979 = vsel %vm261, %v946, 0.0
    %v980 = vadd.f32 %v978, %v979
    %v981 = vsel %vm261, %v947, 0.0
    %v982 = vadd.f32 %v980, %v981
    %v983 = vsel %vm261, %v948, 0.0
    %v984 = vadd.f32 %v982, %v983
    %v985 = vsel %vm261, %v949, 0.0
    %v986 = vadd.f32 %v984, %v985
    %v987 = vsel %vm261, %v950, 0.0
    %v988 = vadd.f32 %v986, %v987
    %v989 = vsel %vm261, %v951, 0.0
    %v990 = vadd.f32 %v988, %v989
    %v991 = vsel %vm261, %v952, 0.0
    %v992 = vadd.f32 %v990, %v991
    %v993 = vsel %vm261, %v953, 0.0
    %v994 = vadd.f32 %v992, %v993
    %v995 = vsel %vm261, %v954, 0.0
    %v996 = vadd.f32 %v994, %v995
    %v997 = vsel %vm261, %v955, 0.0
    %v998 = vadd.f32 %v996, %v997
    %v999 = vsel %vm261, %v956, 0.0
    %v1000 = vadd.f32 %v998, %v999
    %v1001 = vsel %vm261, %v957, 0.0
    %v1002 = vadd.f32 %v1000, %v1001
    %v1003 = vsel %vm261, %v958, 0.0
    %v1004 = vadd.f32 %v1002, %v1003
    %v1005 = vsel %vm261, %v959, 0.0
    %v1006 = vadd.f32 %v1004, %v1005
    %v1007 = vsel %vm261, %v960, 0.0
    %v1008 = vadd.f32 %v1006, %v1007
    %v1009 = vsel %vm261, %v961, 0.0
    %v1010 = vadd.f32 %v1008, %v1009
    %v1011 = vsel %vm261, %v962, 0.0
    %v1012 = vadd.f32 %v1010, %v1011
    %v1013 = vsel %vm261, %v963, 0.0
    %v1014 = vadd.f32 %v1012, %v1013
    %v1015 = vsel %vm261, %v964, 0.0
    %v1016 = vadd.f32 %v1014, %v1015
    %v1017 = vsel %vm261, %v965, 0.0
    %v1018 = vadd.f32 %v1016, %v1017
    %v1019 = vsel %vm261, %v966, 0.0
    %v1020 = vadd.f32 %v1018, %v1019
    %v1021 = vsel %vm261, %v967, 0.0
    %v1022 = vadd.f32 %v1020, %v1021
    %v1023 = vsel %vm261, %v968, 0.0
    %v1024 = vadd.f32 %v1022, %v1023
    %v1025 = vsel %vm261, %v969, 0.0
    %v1026 = vadd.f32 %v1024, %v1025
    %v1027 = vsel %vm261, %v970, 0.0
    %v1028 = vadd.f32 %v1026, %v1027
    %v1029 = vsel %vm261, %v971, 0.0
    %v1030 = vadd.f32 %v1028, %v1029
    %v1031 = vsel %vm261, %v972, 0.0
    %v1032 = vadd.f32 %v1030, %v1031
    %v1033 = vsel %vm261, %v973, 0.0
    %v1034 = vadd.f32 %v1032, %v1033
    %v1035 = vsel %vm261, %v974, 0.0
    %v1036 = vadd.f32 %v1034, %v1035
    %v1037 = vsel %vm261, %v975, 0.0
    %v1038 = vadd.f32 %v1036, %v1037
    %v1039 = vrot.slane %v1038, 4
    %v1040 = vadd.f32 %v1038, %v1039
    %v1041 = vrot.slane %v1040, 2
    %v1042 = vadd.f32 %v1040, %v1041
    %v1043 = vrot.slane %v1042, 1
    %v1044 = vadd.f32 %v1042, %v1043
    %v1045 = vadd.f32 %v943, %v1044
    %1046 = vst.msk [vmem:[#allocation3] sm:$0x1] %vm332, %v1045
    // Predicated region
    $region30: #{tpu_custom_call.1} parent=1 // pred_check
      %p1047 = pneg %p93
    $region31: #{tpu_custom_call.1} parent=1 // pred_check_branch
      %1049 = sbr.rel (%p1047) target = $region33
    $region32: #{tpu_custom_call.1} parent=1 // pred_region
      %v1050 = vld [vmem:[#allocation2] sm:$0x1]
      %v1051 = vsel %vm332, %v1050, 0.0
      %1052 = vadd.xlane.f32.xlu0 %v1051
      %v1053 = vpop.xlane.xlu0 %1052
      %v1054 = vrot.slane %v1053, 4
      %v1055 = vadd.f32 %v1053, %v1054
      %v1056 = vrot.slane %v1055, 2
      %v1057 = vadd.f32 %v1055, %v1056
      %v1058 = vrot.slane %v1057, 1
      %v1059 = vadd.f32 %v1057, %v1058
      %s1060 = vtos %v1059
      %v1061 = vstv %s1060
      %1062 = vst [vmem:[#allocation4] sm:$0xff] %v1061
      %v1063 = vld [vmem:[#allocation3] sm:$0x1]
      %v1064 = vsel %vm332, %v1063, 0.0
      %1065 = vadd.xlane.f32.xlu0 %v1064
      %v1066 = vpop.xlane.xlu0 %1065
      %v1067 = vrot.slane %v1066, 4
      %v1068 = vadd.f32 %v1066, %v1067
      %v1069 = vrot.slane %v1068, 2
      %v1070 = vadd.f32 %v1068, %v1069
      %v1071 = vrot.slane %v1070, 1
      %v1072 = vadd.f32 %v1070, %v1071
      %s1073 = vtos %v1072
      %v1074 = vstv %s1073
      %1075 = vst [vmem:[#allocation6] sm:$0xff] %v1074
    $region33: #{tpu_custom_call.1} parent=1 // pred_fallthru
      _
    // Predicated region
    $region34: #{tpu_custom_call.1} parent=1 // pred_check
      _
    $region35: #{tpu_custom_call.1} parent=1 // pred_check_branch
      %1077 = sbr.rel (0) target = $region37
    $region36: #{tpu_custom_call.1} parent=1 // pred_region
      %s1079 = ssub.s32 128, 128
      %1080 = vsyncadd [#allocation5], %s1079
      %s1082 = sshll.u32 [#allocation4], 4
      %s1083 = int_to_ptr.vmem [resolvable:$true] %s1082
      %1085 = dma.vmem_to_hbm [thread:$0]  %s1083, 128, %s6, [#allocation5]
    $region37: #{tpu_custom_call.1} parent=1 // pred_fallthru
      _
    // Predicated region
    $region38: #{tpu_custom_call.1} parent=1 // pred_check
      _
    $region39: #{tpu_custom_call.1} parent=1 // pred_check_branch
      %1087 = sbr.rel (0) target = $region41
    $region40: #{tpu_custom_call.1} parent=1 // pred_region
      %s1089 = ssub.s32 128, 128
      %1090 = vsyncadd [#allocation7], %s1089
      %s1092 = sshll.u32 [#allocation6], 4
      %s1093 = int_to_ptr.vmem [resolvable:$true] %s1092
      %1095 = dma.vmem_to_hbm [thread:$0]  %s1093, 128, %s7, [#allocation7]
    $region41: #{tpu_custom_call.1} parent=1 // pred_fallthru
      _
    // Predicated region
    $region42: #{tpu_custom_call.1} parent=1 // pred_check
      _
    $region43: #{tpu_custom_call.1} parent=1 // pred_check_branch
      %1097 = sbr.rel (0) target = $region45
    $region44: #{tpu_custom_call.1} parent=1 // pred_region
      %1098 = dma.done [#allocation5], 128
    $region45: #{tpu_custom_call.1} parent=1 // pred_fallthru
      _
    // Predicated region
    $region46: #{tpu_custom_call.1} parent=1 // pred_check
      _
    $region47: #{tpu_custom_call.1} parent=1 // pred_check_branch
      %1100 = sbr.rel (0) target = $region49
    $region48: #{tpu_custom_call.1} parent=1 // pred_region
      %1101 = dma.done [#allocation7], 128
    $region49: #{tpu_custom_call.1} parent=1 // pred_fallthru
      _
    %1102 = vsyncpa [#allocation5], 1
    %1103 = vsyncpa [#allocation7], 1

</llo_original>
